<compile_context>
chip_gen: v5e
topology: v5e:2x2
jax: 0.10.0
libtpu: 0.0.40
codegen_flags: <defaults>
</compile_context>

<pallas_src>
import functools

import jax
import jax.numpy as jnp
from jax.experimental import pallas as pl
from jax.experimental.pallas import tpu as pltpu

_LANE = 128
_SUBLANE_BF16 = 16


def _round_up(n, m):
    return ((n + m - 1) // m) * m


def _cdiv(a, b):
    return -(-a // b)


@functools.lru_cache(maxsize=None)
def _device_config():
    """Chip-generation specific tuning knobs (looked up once)."""
    try:
        kind = jax.devices()[0].device_kind.lower()
    except Exception:
        kind = ""
    is_v5 = "v5" in kind
    is_v7 = "v7" in kind
    return dict(
        # v5e has no bf16 VPU/EUP -> keep SiLU in f32 there.
        silu_bf16=not is_v5,
        # Scoped-VMEM ceiling we allow (v7x only has 64 MiB physical).
        vmem_cap=(56 << 20) if is_v7 else (100 << 20),
        # v7x has 2 TensorCores per chip -> want >=2 parallel grid steps.
        cores=2 if is_v7 else 1,
        # 256x256 MXU on v6e/v7x favours >=256-row tiles; v5e MXU is 128-wide.
        default_block_m=256 if is_v5 else 512,
    )


# ---------------------------------------------------------------------------
# Parameter preparation (one-time, hoisted out of the hot path)
# ---------------------------------------------------------------------------
def prepare_params(params, lane=_LANE):
    """params: list of (W, b) in PyTorch convention, W: (out, in), b: (out,).

    Returns (flat_params, out_dim) with flat_params = (W0t, b0, W1t, b1, ...):
    Wt is bf16 (in_pad, out_pad), b is f32 (1, out_pad). Layer-0 input is
    padded only to the bf16 sublane (16); every other feature dim is padded
    to a lane multiple (128) so inter-layer activations are lane-dense.
    Padded columns stay exactly zero (zero weight cols + zero bias,
    SiLU(0)=0), so results are unchanged.
    """
    flat = []
    for idx, (W, b) in enumerate(params):
        W = jnp.asarray(W, jnp.float32)
        b = jnp.asarray(b, jnp.float32)
        out_f, in_f = W.shape
        in_p = _round_up(in_f, _SUBLANE_BF16) if idx == 0 else _round_up(in_f, lane)
        out_p = _round_up(out_f, lane)
        Wt = jnp.pad(W.T, ((0, in_p - in_f), (0, out_p - out_f)))
        flat.append(Wt.astype(jnp.bfloat16))
        flat.append(jnp.pad(b, (0, out_p - out_f)).reshape(1, -1))
    out_dim = params[-1][0].shape[0]
    return tuple(flat), out_dim


# ---------------------------------------------------------------------------
# Kernels
# ---------------------------------------------------------------------------
def _silu(acc, use_bf16):
    """SiLU(x) = x * sigmoid(x). acc is the f32 matmul accumulator."""
    if use_bf16:
        # v6e/v7x: bf16 VPU/EUP; this also doubles as the bf16 cast for the
        # next layer's matmul input.
        a16 = acc.astype(jnp.bfloat16)
        return a16 * jax.nn.sigmoid(a16)
    # v5e: f32 path; exp + approx reciprocal land on the EUP.
    return acc * pl.reciprocal(1.0 + jnp.exp(-acc), approx=True)


def _make_mlp_kernel(num_linear, out_cols, silu_bf16):
    """Fused MLP kernel.  Ref order: (x, w0, b0, ..., w_{L-1}, b_{L-1}, out)."""

    def kernel(*refs):
        x_ref = refs[0]
        out_ref = refs[-1]
        p = refs[1:-1]
        h = x_ref[...]                               # bf16 activations
        for i in range(num_linear):
            w = p[2 * i][...]                        # bf16 (in_p, out_p)
            b = p[2 * i + 1][...]                    # f32  (1, out_p)
            acc = jnp.dot(h.astype(jnp.bfloat16), w,
                          preferred_element_type=jnp.float32) + b
            h = _silu(acc, silu_bf16) if i < num_linear - 1 else acc
        # Store only the real output columns (out array is unpadded).
        out_ref[...] = h[:, :out_cols].astype(out_ref.dtype)

    return kernel


def _linear_kernel(apply_silu, silu_bf16):
    """Single Linear (+ optional SiLU) kernel for the per-layer fallback."""

    def kernel(x_ref, w_ref, b_ref, o_ref):
        acc = jnp.dot(x_ref[...], w_ref[...],
                      preferred_element_type=jnp.float32) + b_ref[...]
        if apply_silu:
            acc = _silu(acc, silu_bf16)
        o_ref[...] = acc.astype(o_ref.dtype)

    return kernel


# ---------------------------------------------------------------------------
# Tiling helpers
# ---------------------------------------------------------------------------
def _pick_batch_tile(batch, block_m, cores):
    b_ceil = _round_up(batch, 8)
    tm = min(block_m, b_ceil)
    # v7x: guarantee >=2 grid steps on the "parallel" batch axis so both
    # TensorCores get work.
    if cores >= 2 and b_ceil > 8 and _cdiv(b_ceil, tm) < 2:
        tm = max(8, _round_up(_cdiv(batch, 2), 8))
    b_pad = _round_up(batch, tm)
    return tm, b_pad


def _pick_divisor_tile(total, candidates=(512, 256, 128)):
    for c in candidates:
        if c <= total and total % c == 0:
            return c
    return total


# ---------------------------------------------------------------------------
# Fused forward (whole MLP in one pallas_call, params resident in VMEM)
# ---------------------------------------------------------------------------
@functools.partial(jax.jit,
                   static_argnames=("out_dim", "block_m", "single_buffer_params"))
def _mlp_forward_fused(x, flat_params, *, out_dim, block_m, single_buffer_params):
    cfg = _device_config()
    num_linear = len(flat_params) // 2
    out_dtype = x.dtype
    out_itemsize = jnp.dtype(out_dtype).itemsize
    B = x.shape[0]
    in_p0 = flat_params[0].shape[0]

    # Cast once to bf16 (halves input DMA bytes) and pad features / batch.
    h = x.astype(jnp.bfloat16)
    if h.shape[1] != in_p0:
        h = jnp.pad(h, ((0, 0), (0, in_p0 - h.shape[1])))
    tm, b_pad = _pick_batch_tile(B, block_m, cfg["cores"])
    if b_pad != B:
        h = jnp.pad(h, ((0, b_pad - B), (0, 0)))

    weights = flat_params[0::2]
    param_bytes = sum(int(p.size) * p.dtype.itemsize for p in flat_params)

    # Explicit scoped-VMEM budget: resident params (x1 if single-buffered),
    # double-buffered x / out tiles, per-layer f32 accumulator + bf16 act.
    resident = param_bytes * (1 if single_buffer_params else 2)
    io_bytes = 2 * tm * in_p0 * 2 + 2 * tm * out_dim * out_itemsize
    act_bytes = sum(tm * int(w.shape[1]) * 6 for w in weights)
    vmem_limit = int(min(max(2 * (resident + io_bytes + act_bytes), 32 << 20),
                         cfg["vmem_cap"]))

    flops = 2 * b_pad * sum(int(w.shape[0]) * int(w.shape[1]) for w in weights)
    transcendentals = b_pad * sum(int(w.shape[1]) for w in flat_params[0:-2:2])
    bytes_accessed = (b_pad * in_p0 * 2 + param_bytes
                      + b_pad * out_dim * out_itemsize)

    in_specs = [pl.BlockSpec((tm, in_p0), lambda i: (i, 0))]
    for p in flat_params:
        if single_buffer_params:
            # Constant block across grid steps -> double-buffering is waste.
            in_specs.append(pl.BlockSpec(p.shape, lambda i: (0, 0),
                                         pipeline_mode=pl.Buffered(1)))
        else:
            in_specs.append(pl.BlockSpec(p.shape, lambda i: (0, 0)))
    out_specs = pl.BlockSpec((tm, out_dim), lambda i: (i, 0))

    out = pl.pallas_call(
        _make_mlp_kernel(num_linear, out_dim, cfg["silu_bf16"]),
        grid=(b_pad // tm,),
        in_specs=in_specs,
        out_specs=out_specs,
        out_shape=jax.ShapeDtypeStruct((b_pad, out_dim), out_dtype),
        compiler_params=pltpu.CompilerParams(
            dimension_semantics=("parallel",),
            vmem_limit_bytes=vmem_limit),
        cost_estimate=pl.CostEstimate(
            flops=flops, transcendentals=transcendentals,
            bytes_accessed=bytes_accessed),
    )(h, *flat_params)

    return out if b_pad == B else out[:B]


# ---------------------------------------------------------------------------
# Per-layer fallback (for layers too large for full VMEM residency, e.g. v7x)
# ---------------------------------------------------------------------------
def _linear_layer(h, Wt, b, *, apply_silu, tm, silu_bf16, out_dtype, vmem_cap):
    Bp, K = h.shape
    Np = Wt.shape[1]
    tn = _pick_divisor_tile(Np)
    need = 2 * (tm * K * 2 + K * tn * 2 + tn * 4 + tm * tn * 6)
    vmem_limit = int(min(max(2 * need, 32 << 20), vmem_cap))
    return pl.pallas_call(
        _linear_kernel(apply_silu, silu_bf16),
        grid=(Bp // tm, Np // tn),
        in_specs=[pl.BlockSpec((tm, K), lambda i, j: (i, 0)),
                  pl.BlockSpec((K, tn), lambda i, j: (0, j)),
                  pl.BlockSpec((1, tn), lambda i, j: (0, j))],
        out_specs=pl.BlockSpec((tm, tn), lambda i, j: (i, j)),
        out_shape=jax.ShapeDtypeStruct((Bp, Np), out_dtype),
        compiler_params=pltpu.CompilerParams(
            dimension_semantics=("parallel", "parallel"),
            vmem_limit_bytes=vmem_limit),
    )(h, Wt, b)


@functools.partial(jax.jit, static_argnames=("out_dim", "block_m"))
def _mlp_forward_layerwise(x, flat_params, *, out_dim, block_m):
    cfg = _device_config()
    num_linear = len(flat_params) // 2
    out_dtype = x.dtype
    B = x.shape[0]
    in_p0 = flat_params[0].shape[0]

    h = x.astype(jnp.bfloat16)
    if h.shape[1] != in_p0:
        h = jnp.pad(h, ((0, 0), (0, in_p0 - h.shape[1])))
    tm, b_pad = _pick_batch_tile(B, block_m, cfg["cores"])
    if b_pad != B:
        h = jnp.pad(h, ((0, b_pad - B), (0, 0)))

    # TODO(synk): add a K-axis reduction grid (f32 VMEM accumulator with
    # pl.when init/finalize) for layers whose K dimension is itself too large;
    # per-layer N-tiling is sufficient for typical flow-model MLP widths.
    for i in range(num_linear):
        last = i == num_linear - 1
        h = _linear_layer(
            h, flat_params[2 * i], flat_params[2 * i + 1],
            apply_silu=not last, tm=tm, silu_bf16=cfg["silu_bf16"],
            out_dtype=out_dtype if last else jnp.bfloat16,
            vmem_cap=cfg["vmem_cap"])
    return h[:B, :out_dim]


# ---------------------------------------------------------------------------
# Public entry point
# ---------------------------------------------------------------------------
def mlp_forward(x, flat_params, out_dim, block_m=None, force_layerwise=False):
    """MLP forward pass. x: (B, layers[0]) f32; flat_params from prepare_params."""
    cfg = _device_config()
    if block_m is None:
        block_m = cfg["default_block_m"]
    param_bytes = sum(int(p.size) * p.dtype.itemsize for p in flat_params)
    use_layerwise = force_layerwise or param_bytes > 0.6 * cfg["vmem_cap"]
    if use_layerwise:
        return _mlp_forward_layerwise(x, flat_params, out_dim=out_dim,
                                      block_m=block_m)
    try:
        # Single-buffer the grid-constant params (halves resident VMEM).
        return _mlp_forward_fused(x, flat_params, out_dim=out_dim,
                                  block_m=block_m, single_buffer_params=True)
    except Exception:
        # pl.Buffered(1) support varies across jax versions; double-buffered
        # params are a safe (slightly more VMEM-hungry) fallback.
        return _mlp_forward_fused(x, flat_params, out_dim=out_dim,
                                  block_m=block_m, single_buffer_params=False)


# ---------------------------------------------------------------------------
# Init + references
# ---------------------------------------------------------------------------
def init_mlp_params(key, layers):
    """Deterministic PyTorch-style init: U(-1/sqrt(fan_in), 1/sqrt(fan_in))."""
    params = []
    for k in range(len(layers) - 1):
        fan_in, fan_out = layers[k], layers[k + 1]
        key, kw, kb = jax.random.split(key, 3)
        bound = 1.0 / jnp.sqrt(jnp.float32(fan_in))
        W = jax.random.uniform(kw, (fan_out, fan_in), jnp.float32,
                               minval=-bound, maxval=bound)
        b = jax.random.uniform(kb, (fan_out,), jnp.float32,
                               minval=-bound, maxval=bound)
        params.append((W, b))
    return params


def mlp_reference(x, params):
    """Pure-JAX f32 reference matching the PyTorch module."""
    h = x
    n = len(params)
    for i, (W, b) in enumerate(params):
        h = h @ W.T + b
        if i < n - 1:
            h = h * jax.nn.sigmoid(h)
    return h


def mlp_reference_bf16(x, params):
    """Reference mimicking the kernel's bf16-matmul / f32-accumulation path."""
    h = x
    n = len(params)
    for i, (W, b) in enumerate(params):
        Wt = jnp.asarray(W, jnp.float32).T.astype(jnp.bfloat16)
        h = jnp.dot(h.astype(jnp.bfloat16), Wt,
                    preferred_element_type=jnp.float32) + b
        if i < n - 1:
            h = h * jax.nn.sigmoid(h)
    return h


if __name__ == "__main__":
    key = jax.random.PRNGKey(0)
    layers = [32, 64, 64, 16]   # MLP([32, 64, 64, 16]): 2 hidden SiLU layers

    key, kp = jax.random.split(key)
    params = init_mlp_params(kp, layers)
    flat_params, out_dim = prepare_params(params)

    def check(out, x, name):
        ref32 = mlp_reference(x, params)
        ref16 = mlp_reference_bf16(x, params)
        assert out.shape == ref32.shape, (name, out.shape, ref32.shape)
        err16 = float(jnp.max(jnp.abs(out - ref16)))
        err32 = float(jnp.max(jnp.abs(out - ref32)))
        # Tight check vs a reference using the same bf16-matmul precision path.
        assert jnp.allclose(out, ref16, atol=2e-2, rtol=2e-2), (name, err16)
        # Looser check vs the exact f32 module semantics.
        assert jnp.allclose(out, ref32, atol=5e-2, rtol=5e-2), (name, err32)

    # 1) Fused path, small batch.
    key, kx = jax.random.split(key)
    x_small = jax.random.normal(kx, (8, layers[0]), jnp.float32)
    out = jax.block_until_ready(mlp_forward(x_small, flat_params, out_dim))
    check(out, x_small, "fused_small")

    # 2) Fused path with a multi-step batch grid (exercises tiling + padding).
    key, kx = jax.random.split(key)
    x_big = jax.random.normal(kx, (200, layers[0]), jnp.float32)
    out = jax.block_until_ready(
        mlp_forward(x_big, flat_params, out_dim, block_m=128))
    check(out, x_big, "fused_tiled")

    # 3) Per-layer fallback path (used when params would not fit VMEM, e.g. v7x).
    out = jax.block_until_ready(
        mlp_forward(x_small, flat_params, out_dim, force_layerwise=True))
    check(out, x_small, "layerwise")

    print("KERNEL_OK")
</pallas_src>

<mosaic_0001>
module attributes {stable_mosaic.version = 11 : i64} {
  func.func @kernel(%arg0: i32, %arg1: memref<8x32xbf16, #tpu.memory_space<vmem>>, %arg2: memref<32x128xbf16, #tpu.memory_space<vmem>>, %arg3: memref<1x128xf32, #tpu.memory_space<vmem>>, %arg4: memref<128x128xbf16, #tpu.memory_space<vmem>>, %arg5: memref<1x128xf32, #tpu.memory_space<vmem>>, %arg6: memref<128x128xbf16, #tpu.memory_space<vmem>>, %arg7: memref<1x128xf32, #tpu.memory_space<vmem>>, %arg8: memref<8x16xf32, #tpu.memory_space<vmem>>) attributes {dimension_semantics = [#tpu.dimension_semantics<parallel>], iteration_bounds = array<i64: 1>, scalar_prefetch = 0 : i64, scratch_operands = 0 : i64, tpu.core_type = #tpu.core_type<tc>, window_params = [{transform_indices = @transform_0, window_bounds = array<i64: 8, 32>}, {pipeline_mode = #tpu.pipeline_mode<synchronous>, transform_indices = @transform_1, window_bounds = array<i64: 32, 128>}, {pipeline_mode = #tpu.pipeline_mode<synchronous>, transform_indices = @transform_2, window_bounds = array<i64: 1, 128>}, {pipeline_mode = #tpu.pipeline_mode<synchronous>, transform_indices = @transform_3, window_bounds = array<i64: 128, 128>}, {pipeline_mode = #tpu.pipeline_mode<synchronous>, transform_indices = @transform_4, window_bounds = array<i64: 1, 128>}, {pipeline_mode = #tpu.pipeline_mode<synchronous>, transform_indices = @transform_5, window_bounds = array<i64: 128, 128>}, {pipeline_mode = #tpu.pipeline_mode<synchronous>, transform_indices = @transform_6, window_bounds = array<i64: 1, 128>}, {transform_indices = @transform_7, window_bounds = array<i64: 8, 16>}]} {
    %c0 = arith.constant 0 : index
    %c0_0 = arith.constant 0 : index
    %0 = vector.load %arg1[%c0, %c0_0] : memref<8x32xbf16, #tpu.memory_space<vmem>>, vector<8x32xbf16>
    %c0_1 = arith.constant 0 : index
    %c0_2 = arith.constant 0 : index
    %1 = vector.load %arg2[%c0_1, %c0_2] : memref<32x128xbf16, #tpu.memory_space<vmem>>, vector<32x128xbf16>
    %c0_3 = arith.constant 0 : index
    %c0_4 = arith.constant 0 : index
    %2 = vector.load %arg3[%c0_3, %c0_4] : memref<1x128xf32, #tpu.memory_space<vmem>>, vector<1x128xf32>
    %cst = arith.constant dense<0.000000e+00> : vector<8x128xf32>
    %3 = tpu.matmul %0, %1, %cst {dimension_numbers = #tpu.dot_dimension_numbers<[1], [0], [0], [1], [0, 0, 1, 1], [], []>} : vector<8x32xbf16>, vector<32x128xbf16>, vector<8x128xf32> -> vector<8x128xf32>
    %4 = vector.broadcast %2 : vector<1x128xf32> to vector<8x128xf32>
    %5 = arith.addf %3, %4 : vector<8x128xf32>
    %6 = arith.truncf %5 : vector<8x128xf32> to vector<8x128xbf16>
    %7 = arith.negf %6 : vector<8x128xbf16>
    %8 = math.exp %7 : vector<8x128xbf16>
    %cst_5 = arith.constant 1.000000e+00 : bf16
    %9 = vector.broadcast %cst_5 : bf16 to vector<8x128xbf16>
    %10 = arith.addf %9, %8 : vector<8x128xbf16>
    %11 = arith.divf %9, %10 : vector<8x128xbf16>
    %12 = arith.mulf %6, %11 : vector<8x128xbf16>
    %c0_6 = arith.constant 0 : index
    %c0_7 = arith.constant 0 : index
    %13 = vector.load %arg4[%c0_6, %c0_7] : memref<128x128xbf16, #tpu.memory_space<vmem>>, vector<128x128xbf16>
    %c0_8 = arith.constant 0 : index
    %c0_9 = arith.constant 0 : index
    %14 = vector.load %arg5[%c0_8, %c0_9] : memref<1x128xf32, #tpu.memory_space<vmem>>, vector<1x128xf32>
    %cst_10 = arith.constant dense<0.000000e+00> : vector<8x128xf32>
    %15 = tpu.matmul %12, %13, %cst_10 {dimension_numbers = #tpu.dot_dimension_numbers<[1], [0], [0], [1], [0, 0, 1, 1], [], []>} : vector<8x128xbf16>, vector<128x128xbf16>, vector<8x128xf32> -> vector<8x128xf32>
    %16 = vector.broadcast %14 : vector<1x128xf32> to vector<8x128xf32>
    %17 = arith.addf %15, %16 : vector<8x128xf32>
    %18 = arith.truncf %17 : vector<8x128xf32> to vector<8x128xbf16>
    %19 = arith.negf %18 : vector<8x128xbf16>
    %20 = math.exp %19 : vector<8x128xbf16>
    %cst_11 = arith.constant 1.000000e+00 : bf16
    %21 = vector.broadcast %cst_11 : bf16 to vector<8x128xbf16>
    %22 = arith.addf %21, %20 : vector<8x128xbf16>
    %23 = arith.divf %21, %22 : vector<8x128xbf16>
    %24 = arith.mulf %18, %23 : vector<8x128xbf16>
    %c0_12 = arith.constant 0 : index
    %c0_13 = arith.constant 0 : index
    %25 = vector.load %arg6[%c0_12, %c0_13] : memref<128x128xbf16, #tpu.memory_space<vmem>>, vector<128x128xbf16>
    %c0_14 = arith.constant 0 : index
    %c0_15 = arith.constant 0 : index
    %26 = vector.load %arg7[%c0_14, %c0_15] : memref<1x128xf32, #tpu.memory_space<vmem>>, vector<1x128xf32>
    %cst_16 = arith.constant dense<0.000000e+00> : vector<8x128xf32>
    %27 = tpu.matmul %24, %25, %cst_16 {dimension_numbers = #tpu.dot_dimension_numbers<[1], [0], [0], [1], [0, 0, 1, 1], [], []>} : vector<8x128xbf16>, vector<128x128xbf16>, vector<8x128xf32> -> vector<8x128xf32>
    %28 = vector.broadcast %26 : vector<1x128xf32> to vector<8x128xf32>
    %29 = arith.addf %27, %28 : vector<8x128xf32>
    %30 = vector.extract_strided_slice %29 {offsets = [0, 0], sizes = [8, 16], strides = [1, 1]} : vector<8x128xf32> to vector<8x16xf32>
    %c0_17 = arith.constant 0 : index
    %c0_18 = arith.constant 0 : index
    %31 = vector.load %arg8[%c0_17, %c0_18] : memref<8x16xf32, #tpu.memory_space<vmem>>, vector<8x16xf32>
    tpu.vector_store %arg8[%c0_17, %c0_18], %30 {strides = array<i32>} : memref<8x16xf32, #tpu.memory_space<vmem>>, vector<8x16xf32>,
    return
  }
  func.func @transform_0(%arg0: i32) -> (i32, i32) {
    %c0_i32 = arith.constant 0 : i32
    %c0_i32_0 = arith.constant 0 : i32
    return %arg0, %c0_i32 : i32, i32
  }
  func.func @transform_1(%arg0: i32) -> (i32, i32) {
    %c0_i32 = arith.constant 0 : i32
    %c0_i32_0 = arith.constant 0 : i32
    %c0_i32_1 = arith.constant 0 : i32
    return %c0_i32, %c0_i32_0 : i32, i32
  }
  func.func @transform_2(%arg0: i32) -> (i32, i32) {
    %c0_i32 = arith.constant 0 : i32
    %c0_i32_0 = arith.constant 0 : i32
    %c0_i32_1 = arith.constant 0 : i32
    return %c0_i32, %c0_i32_0 : i32, i32
  }
  func.func @transform_3(%arg0: i32) -> (i32, i32) {
    %c0_i32 = arith.constant 0 : i32
    %c0_i32_0 = arith.constant 0 : i32
    %c0_i32_1 = arith.constant 0 : i32
    return %c0_i32, %c0_i32_0 : i32, i32
  }
  func.func @transform_4(%arg0: i32) -> (i32, i32) {
    %c0_i32 = arith.constant 0 : i32
    %c0_i32_0 = arith.constant 0 : i32
    %c0_i32_1 = arith.constant 0 : i32
    return %c0_i32, %c0_i32_0 : i32, i32
  }
  func.func @transform_5(%arg0: i32) -> (i32, i32) {
    %c0_i32 = arith.constant 0 : i32
    %c0_i32_0 = arith.constant 0 : i32
    %c0_i32_1 = arith.constant 0 : i32
    return %c0_i32, %c0_i32_0 : i32, i32
  }
  func.func @transform_6(%arg0: i32) -> (i32, i32) {
    %c0_i32 = arith.constant 0 : i32
    %c0_i32_0 = arith.constant 0 : i32
    %c0_i32_1 = arith.constant 0 : i32
    return %c0_i32, %c0_i32_0 : i32, i32
  }
  func.func @transform_7(%arg0: i32) -> (i32, i32) {
    %c0_i32 = arith.constant 0 : i32
    %c0_i32_0 = arith.constant 0 : i32
    return %arg0, %c0_i32 : i32, i32
  }
}

module attributes {stable_mosaic.version = 11 : i64} {
  func.func @kernel(%arg0: i32, %arg1: memref<8x32xbf16, #tpu.memory_space<vmem>>, %arg2: memref<32x128xbf16, #tpu.memory_space<vmem>>, %arg3: memref<1x128xf32, #tpu.memory_space<vmem>>, %arg4: memref<128x128xbf16, #tpu.memory_space<vmem>>, %arg5: memref<1x128xf32, #tpu.memory_space<vmem>>, %arg6: memref<128x128xbf16, #tpu.memory_space<vmem>>, %arg7: memref<1x128xf32, #tpu.memory_space<vmem>>, %arg8: memref<8x16xf32, #tpu.memory_space<vmem>>) attributes {dimension_semantics = [#tpu.dimension_semantics<parallel>], iteration_bounds = array<i64: 1>, scalar_prefetch = 0 : i64, scratch_operands = 0 : i64, tpu.core_type = #tpu.core_type<tc>, window_params = [{transform_indices = @transform_0, window_bounds = array<i64: 8, 32>}, {pipeline_mode = #tpu.pipeline_mode<synchronous>, transform_indices = @transform_1, window_bounds = array<i64: 32, 128>}, {pipeline_mode = #tpu.pipeline_mode<synchronous>, transform_indices = @transform_2, window_bounds = array<i64: 1, 128>}, {pipeline_mode = #tpu.pipeline_mode<synchronous>, transform_indices = @transform_3, window_bounds = array<i64: 128, 128>}, {pipeline_mode = #tpu.pipeline_mode<synchronous>, transform_indices = @transform_4, window_bounds = array<i64: 1, 128>}, {pipeline_mode = #tpu.pipeline_mode<synchronous>, transform_indices = @transform_5, window_bounds = array<i64: 128, 128>}, {pipeline_mode = #tpu.pipeline_mode<synchronous>, transform_indices = @transform_6, window_bounds = array<i64: 1, 128>}, {transform_indices = @transform_7, window_bounds = array<i64: 8, 16>}]} {
    %c0 = arith.constant 0 : index
    %c0_0 = arith.constant 0 : index
    %0 = vector.load %arg1[%c0, %c0_0] : memref<8x32xbf16, #tpu.memory_space<vmem>>, vector<8x32xbf16>
    %c0_1 = arith.constant 0 : index
    %c0_2 = arith.constant 0 : index
    %1 = vector.load %arg2[%c0_1, %c0_2] : memref<32x128xbf16, #tpu.memory_space<vmem>>, vector<32x128xbf16>
    %c0_3 = arith.constant 0 : index
    %c0_4 = arith.constant 0 : index
    %2 = vector.load %arg3[%c0_3, %c0_4] : memref<1x128xf32, #tpu.memory_space<vmem>>, vector<1x128xf32>
    %cst = arith.constant dense<0.000000e+00> : vector<8x128xf32>
    %3 = tpu.matmul %0, %1, %cst {dimension_numbers = #tpu.dot_dimension_numbers<[1], [0], [0], [1], [0, 0, 1, 1], [], []>} : vector<8x32xbf16>, vector<32x128xbf16>, vector<8x128xf32> -> vector<8x128xf32>
    %4 = vector.broadcast %2 : vector<1x128xf32> to vector<8x128xf32>
    %5 = arith.addf %3, %4 : vector<8x128xf32>
    %6 = arith.truncf %5 : vector<8x128xf32> to vector<8x128xbf16>
    %7 = arith.negf %6 : vector<8x128xbf16>
    %8 = math.exp %7 : vector<8x128xbf16>
    %cst_5 = arith.constant 1.000000e+00 : bf16
    %9 = vector.broadcast %cst_5 : bf16 to vector<8x128xbf16>
    %10 = arith.addf %9, %8 : vector<8x128xbf16>
    %11 = arith.divf %9, %10 : vector<8x128xbf16>
    %12 = arith.mulf %6, %11 : vector<8x128xbf16>
    %c0_6 = arith.constant 0 : index
    %c0_7 = arith.constant 0 : index
    %13 = vector.load %arg4[%c0_6, %c0_7] : memref<128x128xbf16, #tpu.memory_space<vmem>>, vector<128x128xbf16>
    %c0_8 = arith.constant 0 : index
    %c0_9 = arith.constant 0 : index
    %14 = vector.load %arg5[%c0_8, %c0_9] : memref<1x128xf32, #tpu.memory_space<vmem>>, vector<1x128xf32>
    %cst_10 = arith.constant dense<0.000000e+00> : vector<8x128xf32>
    %15 = tpu.matmul %12, %13, %cst_10 {dimension_numbers = #tpu.dot_dimension_numbers<[1], [0], [0], [1], [0, 0, 1, 1], [], []>} : vector<8x128xbf16>, vector<128x128xbf16>, vector<8x128xf32> -> vector<8x128xf32>
    %16 = vector.broadcast %14 : vector<1x128xf32> to vector<8x128xf32>
    %17 = arith.addf %15, %16 : vector<8x128xf32>
    %18 = arith.truncf %17 : vector<8x128xf32> to vector<8x128xbf16>
    %19 = arith.negf %18 : vector<8x128xbf16>
    %20 = math.exp %19 : vector<8x128xbf16>
    %cst_11 = arith.constant 1.000000e+00 : bf16
    %21 = vector.broadcast %cst_11 : bf16 to vector<8x128xbf16>
    %22 = arith.addf %21, %20 : vector<8x128xbf16>
    %23 = arith.divf %21, %22 : vector<8x128xbf16>
    %24 = arith.mulf %18, %23 : vector<8x128xbf16>
    %c0_12 = arith.constant 0 : index
    %c0_13 = arith.constant 0 : index
    %25 = vector.load %arg6[%c0_12, %c0_13] : memref<128x128xbf16, #tpu.memory_space<vmem>>, vector<128x128xbf16>
    %c0_14 = arith.constant 0 : index
    %c0_15 = arith.constant 0 : index
    %26 = vector.load %arg7[%c0_14, %c0_15] : memref<1x128xf32, #tpu.memory_space<vmem>>, vector<1x128xf32>
    %cst_16 = arith.constant dense<0.000000e+00> : vector<8x128xf32>
    %27 = tpu.matmul %24, %25, %cst_16 {dimension_numbers = #tpu.dot_dimension_numbers<[1], [0], [0], [1], [0, 0, 1, 1], [], []>} : vector<8x128xbf16>, vector<128x128xbf16>, vector<8x128xf32> -> vector<8x128xf32>
    %28 = vector.broadcast %26 : vector<1x128xf32> to vector<8x128xf32>
    %29 = arith.addf %27, %28 : vector<8x128xf32>
    %30 = vector.extract_strided_slice %29 {offsets = [0, 0], sizes = [8, 16], strides = [1, 1]} : vector<8x128xf32> to vector<8x16xf32>
    %c0_17 = arith.constant 0 : index
    %c0_18 = arith.constant 0 : index
    %31 = vector.load %arg8[%c0_17, %c0_18] : memref<8x16xf32, #tpu.memory_space<vmem>>, vector<8x16xf32>
    tpu.vector_store %arg8[%c0_17, %c0_18], %30 {strides = array<i32>} : memref<8x16xf32, #tpu.memory_space<vmem>>, vector<8x16xf32>,
    return
  }
  func.func @transform_0(%arg0: i32) -> (i32, i32) {
    %c0_i32 = arith.constant 0 : i32
    %c0_i32_0 = arith.constant 0 : i32
    return %arg0, %c0_i32 : i32, i32
  }
  func.func @transform_1(%arg0: i32) -> (i32, i32) {
    %c0_i32 = arith.constant 0 : i32
    %c0_i32_0 = arith.constant 0 : i32
    %c0_i32_1 = arith.constant 0 : i32
    return %c0_i32, %c0_i32_0 : i32, i32
  }
  func.func @transform_2(%arg0: i32) -> (i32, i32) {
    %c0_i32 = arith.constant 0 : i32
    %c0_i32_0 = arith.constant 0 : i32
    %c0_i32_1 = arith.constant 0 : i32
    return %c0_i32, %c0_i32_0 : i32, i32
  }
  func.func @transform_3(%arg0: i32) -> (i32, i32) {
    %c0_i32 = arith.constant 0 : i32
    %c0_i32_0 = arith.constant 0 : i32
    %c0_i32_1 = arith.constant 0 : i32
    return %c0_i32, %c0_i32_0 : i32, i32
  }
  func.func @transform_4(%arg0: i32) -> (i32, i32) {
    %c0_i32 = arith.constant 0 : i32
    %c0_i32_0 = arith.constant 0 : i32
    %c0_i32_1 = arith.constant 0 : i32
    return %c0_i32, %c0_i32_0 : i32, i32
  }
  func.func @transform_5(%arg0: i32) -> (i32, i32) {
    %c0_i32 = arith.constant 0 : i32
    %c0_i32_0 = arith.constant 0 : i32
    %c0_i32_1 = arith.constant 0 : i32
    return %c0_i32, %c0_i32_0 : i32, i32
  }
  func.func @transform_6(%arg0: i32) -> (i32, i32) {
    %c0_i32 = arith.constant 0 : i32
    %c0_i32_0 = arith.constant 0 : i32
    %c0_i32_1 = arith.constant 0 : i32
    return %c0_i32, %c0_i32_0 : i32, i32
  }
  func.func @transform_7(%arg0: i32) -> (i32, i32) {
    %c0_i32 = arith.constant 0 : i32
    %c0_i32_0 = arith.constant 0 : i32
    return %arg0, %c0_i32 : i32, i32
  }
}

</mosaic_0001>

<llo_original>
// kernel: _mlp_forward_fused.1
$region0: #{_mlp_forward_fused.1}
  #allocation0 [shape = 'u32[]', space=smem, size = 0x4, offset = 0x4, fixed_abs, tag = 'smem constant byte address 0x4 - core index']
  #allocation1 [shape = 'u32[72,128]{1,0:T(1,128)}', space=vmem, size = 0x9000, scoped, tag = 'internal scratch']
  %s0 = inlined_call_operand.vmem [shape: bf16[8,32], index: 0, kind: input, shape index: {}]
  %s1 = inlined_call_operand.hbm [shape: bf16[32,128], index: 1, kind: input, shape index: {}]
  %s2 = inlined_call_operand.vmem [shape: f32[1,128], index: 2, kind: input, shape index: {}]
  %s3 = inlined_call_operand.hbm [shape: bf16[128,128], index: 3, kind: input, shape index: {}]
  %s4 = inlined_call_operand.vmem [shape: f32[1,128], index: 4, kind: input, shape index: {}]
  %s5 = inlined_call_operand.hbm [shape: bf16[128,128], index: 5, kind: input, shape index: {}]
  %s6 = inlined_call_operand.vmem [shape: f32[1,128], index: 6, kind: input, shape index: {}]
  %s7 = inlined_call_operand.hbm [shape: f32[8,16], index: 7, kind: output, shape index: {}]
  %s8 = sld [smem:[#allocation0]]
  $region50: #{_mlp_forward_fused.1} parent=0
    _
  %s10 = ssub.s32 1, %s8
  %s11 = scalar_select 0, %s10, %s8
  $region1: #{_mlp_forward_fused.1} parent=0
    #allocation2 [shape = 'u8[8192]{0}', space=vmem, size = 0x2000, scoped, tag = 'input window, operand 1, single buffered']
    #allocation3 [shape = 's32[1]{0}', space=sflag, size = 0x4, scoped, tag = 'scoped memory for _mlp_forward_fused.1']
    #allocation4 [shape = 's32[1]{0}', space=sflag, size = 0x4, scoped, tag = 'scoped memory for _mlp_forward_fused.1']
    #allocation5 [shape = 'u8[32768]{0}', space=vmem, size = 0x8000, scoped, tag = 'input window, operand 3, single buffered']
    #allocation6 [shape = 's32[1]{0}', space=sflag, size = 0x4, scoped, tag = 'scoped memory for _mlp_forward_fused.1']
    #allocation7 [shape = 'u8[32768]{0}', space=vmem, size = 0x8000, scoped, tag = 'input window, operand 5, single buffered']
    #allocation8 [shape = 'u8[4096]{0}', space=vmem, size = 0x1000, scoped, tag = 'output window, operand 0, single buffered']
    %12 = vsyncpa [#allocation3], 0
    %13 = vsyncpa [#allocation6], 0
    %14 = vsyncpa [#allocation4], 0
    // Predicated region
    $region2: #{_mlp_forward_fused.1} parent=1 // pred_check
      _
    $region3: #{_mlp_forward_fused.1} parent=1 // pred_check_branch
      %16 = sbr.rel (0) target = $region5
    $region4: #{_mlp_forward_fused.1} parent=1 // pred_region
      _
    $region5: #{_mlp_forward_fused.1} parent=1 // pred_fallthru
      _
    // Predicated region
    $region6: #{_mlp_forward_fused.1} parent=1 // pred_check
      _
    $region7: #{_mlp_forward_fused.1} parent=1 // pred_check_branch
      %18 = sbr.rel (0) target = $region9
    $region8: #{_mlp_forward_fused.1} parent=1 // pred_region
      %20 = vsyncadd [#allocation3], 0
      %s21 = sshll.u32 %s1, 4
      %s22 = int_to_ptr.hbm [resolvable:$true] %s21
      %s23 = sshll.u32 [#allocation2], 4
      %s24 = int_to_ptr.vmem [resolvable:$true] %s23
      %29 = dma.hbm_to_vmem [thread:$0]  %s22, 256, %s24, [#allocation3], 64, 64, 4
    $region9: #{_mlp_forward_fused.1} parent=1 // pred_fallthru
      _
    // Predicated region
    $region10: #{_mlp_forward_fused.1} parent=1 // pred_check
      _
    $region11: #{_mlp_forward_fused.1} parent=1 // pred_check_branch
      %31 = sbr.rel (0) target = $region13
    $region12: #{_mlp_forward_fused.1} parent=1 // pred_region
      _
    $region13: #{_mlp_forward_fused.1} parent=1 // pred_fallthru
      _
    // Predicated region
    $region14: #{_mlp_forward_fused.1} parent=1 // pred_check
      _
    $region15: #{_mlp_forward_fused.1} parent=1 // pred_check_branch
      %33 = sbr.rel (0) target = $region17
    $region16: #{_mlp_forward_fused.1} parent=1 // pred_region
      %35 = vsyncadd [#allocation6], 0
      %s36 = sshll.u32 %s3, 4
      %s37 = int_to_ptr.hbm [resolvable:$true] %s36
      %s38 = sshll.u32 [#allocation5], 4
      %s39 = int_to_ptr.vmem [resolvable:$true] %s38
      %44 = dma.hbm_to_vmem [thread:$0]  %s37, 1024, %s39, [#allocation6], 64, 64, 4
    $region17: #{_mlp_forward_fused.1} parent=1 // pred_fallthru
      _
    // Predicated region
    $region18: #{_mlp_forward_fused.1} parent=1 // pred_check
      _
    $region19: #{_mlp_forward_fused.1} parent=1 // pred_check_branch
      %46 = sbr.rel (0) target = $region21
    $region20: #{_mlp_forward_fused.1} parent=1 // pred_region
      _
    $region21: #{_mlp_forward_fused.1} parent=1 // pred_fallthru
      _
    // Predicated region
    $region22: #{_mlp_forward_fused.1} parent=1 // pred_check
      _
    $region23: #{_mlp_forward_fused.1} parent=1 // pred_check_branch
      %48 = sbr.rel (0) target = $region25
    $region24: #{_mlp_forward_fused.1} parent=1 // pred_region
      %50 = vsyncadd [#allocation6], 0
      %s51 = sshll.u32 %s5, 4
      %s52 = int_to_ptr.hbm [resolvable:$true] %s51
      %s53 = sshll.u32 [#allocation7], 4
      %s54 = int_to_ptr.vmem [resolvable:$true] %s53
      %59 = dma.hbm_to_vmem [thread:$0]  %s52, 1024, %s54, [#allocation6], 64, 64, 4
    $region25: #{_mlp_forward_fused.1} parent=1 // pred_fallthru
      _
    // Predicated region
    $region26: #{_mlp_forward_fused.1} parent=1 // pred_check
      _
    $region27: #{_mlp_forward_fused.1} parent=1 // pred_check_branch
      %61 = sbr.rel (0) target = $region29
    $region28: #{_mlp_forward_fused.1} parent=1 // pred_region
      _
    $region29: #{_mlp_forward_fused.1} parent=1 // pred_fallthru
      _
    // Predicated region
    $region30: #{_mlp_forward_fused.1} parent=1 // pred_check
      _
    $region31: #{_mlp_forward_fused.1} parent=1 // pred_check_branch
      %63 = sbr.rel (0) target = $region33
    $region32: #{_mlp_forward_fused.1} parent=1 // pred_region
      %65 = dma.done [#allocation3], 256
    $region33: #{_mlp_forward_fused.1} parent=1 // pred_fallthru
      _
    // Predicated region
    $region34: #{_mlp_forward_fused.1} parent=1 // pred_check
      _
    $region35: #{_mlp_forward_fused.1} parent=1 // pred_check_branch
      %67 = sbr.rel (0) target = $region37
    $region36: #{_mlp_forward_fused.1} parent=1 // pred_region
      %69 = dma.done [#allocation6], 1024
    $region37: #{_mlp_forward_fused.1} parent=1 // pred_fallthru
      _
    // Predicated region
    $region38: #{_mlp_forward_fused.1} parent=1 // pred_check
      _
    $region39: #{_mlp_forward_fused.1} parent=1 // pred_check_branch
      %71 = sbr.rel (0) target = $region41
    $region40: #{_mlp_forward_fused.1} parent=1 // pred_region
      %73 = dma.done [#allocation6], 1024
    $region41: #{_mlp_forward_fused.1} parent=1 // pred_fallthru
      _
    %v76 = vld [vmem:[%s0] sm:$0xf]
    %v77 = vld [vmem:[#allocation2] sm:$0xf]
    %v78 = vld [vmem:[#allocation2 + $0x4] sm:$0xf]
    %v79 = vld [vmem:[#allocation2 + $0x8] sm:$0xf]
    %v80 = vld [vmem:[#allocation2 + $0xc] sm:$0xf]
    %v81 = vld [vmem:[%s2] sm:$0x1]
    %v83 = vperm.slane %v81, 0
    %v89 = vunpack.c.l.b16 %v77
    %v90 = vunpack.c.l.b16 %v78
    %v91 = vunpack.c.l.b16 %v79
    %v92 = vunpack.c.l.b16 %v80
    %v93 = vpack.c.b16 %v90, %v89
    %v94 = vpack.c.b16 %v92, %v91
    %vm97 = vcmask 261120
    %v99 = vsel %vm97, %v76, 0
    %101 = vmatpush.bf16.msra.mxu0 0
    %102 = vmatpush.bf16.msra.mxu0 0
    %103 = vmatpush.bf16.msra.mxu0 0
    %104 = vmatpush.bf16.msra.mxu0 0
    %105 = vmatpush.bf16.msra.mxu0 0
    %106 = vmatpush.bf16.msra.mxu0 0
    %107 = vmatpush.bf16.msra.mxu0 %v94
    %108 = vmatpush.bf16.msra.mxu0 %v93
    %109 = vmatmul.bf16.gmra.mxu0 %v99
    %v110 = vpop.f32.mrf.mxu0
    %v111 = vadd.f32 %v83, %v110
    %v112 = vpop.f32.mrf.mxu0
    %113 = vdwg.mxu0
    %v114 = vpack.c.bf16 %v111, %v111
    %v115 = vxor.u32 %v114, 2147516416
    %v116 = vunpack.c.l.bf16 %v115
    %v117 = vmul.f32 %v116, 1.442695
    %v118 = vpow.pop %v117
    %v119 = vpack.c.bf16 %v118, %v118
    %v120 = vunpack.c.l.bf16 %v119
    %v121 = vadd.f32 %v120, 1.0
    %v122 = vpack.c.bf16 %v121, %v121
    %v123 = vunpack.c.h.bf16 1065369472
    %v124 = vunpack.c.l.bf16 1065369472
    %v125 = vunpack.c.h.bf16 %v122
    %v126 = vunpack.c.l.bf16 %v122
    %v127 = vrcp.pop %v125
    %v128 = vmul.f32 %v123, %v127
    %v129 = vrcp.pop %v126
    %v130 = vmul.f32 %v124, %v129
    %v131 = vpack.c.bf16 %v128, %v130
    %v132 = vunpack.c.l.bf16 %v114
    %v133 = vunpack.c.l.bf16 %v131
    %v134 = vmul.f32 %v132, %v133
    %v135 = vpack.c.bf16 %v134, %v134
    %v136 = vld [vmem:[#allocation5] sm:$0xf]
    %v137 = vld [vmem:[#allocation5 + $0x4] sm:$0xf]
    %v138 = vld [vmem:[#allocation5 + $0x8] sm:$0xf]
    %v139 = vld [vmem:[#allocation5 + $0xc] sm:$0xf]
    %v140 = vld [vmem:[#allocation5 + $0x10] sm:$0xf]
    %v141 = vld [vmem:[#allocation5 + $0x14] sm:$0xf]
    %v142 = vld [vmem:[#allocation5 + $0x18] sm:$0xf]
    %v143 = vld [vmem:[#allocation5 + $0x1c] sm:$0xf]
    %v144 = vld [vmem:[#allocation5 + $0x20] sm:$0xf]
    %v145 = vld [vmem:[#allocation5 + $0x24] sm:$0xf]
    %v146 = vld [vmem:[#allocation5 + $0x28] sm:$0xf]
    %v147 = vld [vmem:[#allocation5 + $0x2c] sm:$0xf]
    %v148 = vld [vmem:[#allocation5 + $0x30] sm:$0xf]
    %v149 = vld [vmem:[#allocation5 + $0x34] sm:$0xf]
    %v150 = vld [vmem:[#allocation5 + $0x38] sm:$0xf]
    %v151 = vld [vmem:[#allocation5 + $0x3c] sm:$0xf]
    %v152 = vld [vmem:[%s4] sm:$0x1]
    %v154 = vperm.slane %v152, 0
    %v172 = vunpack.c.l.b16 %v136
    %v173 = vunpack.c.l.b16 %v137
    %v174 = vunpack.c.l.b16 %v138
    %v175 = vunpack.c.l.b16 %v139
    %v176 = vunpack.c.l.b16 %v140
    %v177 = vunpack.c.l.b16 %v141
    %v178 = vunpack.c.l.b16 %v142
    %v179 = vunpack.c.l.b16 %v143
    %v180 = vunpack.c.l.b16 %v144
    %v181 = vunpack.c.l.b16 %v145
    %v182 = vunpack.c.l.b16 %v146
    %v183 = vunpack.c.l.b16 %v147
    %v184 = vunpack.c.l.b16 %v148
    %v185 = vunpack.c.l.b16 %v149
    %v186 = vunpack.c.l.b16 %v150
    %v187 = vunpack.c.l.b16 %v151
    %v188 = vpack.c.b16 %v173, %v172
    %v189 = vpack.c.b16 %v175, %v174
    %v190 = vpack.c.b16 %v177, %v176
    %v191 = vpack.c.b16 %v179, %v178
    %v192 = vpack.c.b16 %v181, %v180
    %v193 = vpack.c.b16 %v183, %v182
    %v194 = vpack.c.b16 %v185, %v184
    %v195 = vpack.c.b16 %v187, %v186
    %204 = vmatpush.bf16.msra.mxu0 %v195
    %205 = vmatpush.bf16.msra.mxu0 %v194
    %206 = vmatpush.bf16.msra.mxu0 %v193
    %207 = vmatpush.bf16.msra.mxu0 %v192
    %208 = vmatpush.bf16.msra.mxu0 %v191
    %209 = vmatpush.bf16.msra.mxu0 %v190
    %210 = vmatpush.bf16.msra.mxu0 %v189
    %211 = vmatpush.bf16.msra.mxu0 %v188
    %212 = vmatmul.bf16.gmra.mxu0 %v135
    %v213 = vpop.f32.mrf.mxu0
    %v214 = vadd.f32 %v154, %v213
    %v215 = vpop.f32.mrf.mxu0
    %216 = vdwg.mxu0
    %v217 = vpack.c.bf16 %v214, %v214
    %v218 = vxor.u32 %v217, 2147516416
    %v219 = vunpack.c.l.bf16 %v218
    %v220 = vmul.f32 %v219, 1.442695
    %v221 = vpow.pop %v220
    %v222 = vpack.c.bf16 %v221, %v221
    %v223 = vunpack.c.l.bf16 %v222
    %v224 = vadd.f32 %v223, 1.0
    %v225 = vpack.c.bf16 %v224, %v224
    %v226 = vunpack.c.h.bf16 %v225
    %v227 = vunpack.c.l.bf16 %v225
    %v228 = vrcp.pop %v226
    %v229 = vmul.f32 %v123, %v228
    %v230 = vrcp.pop %v227
    %v231 = vmul.f32 %v124, %v230
    %v232 = vpack.c.bf16 %v229, %v231
    %v233 = vunpack.c.l.bf16 %v217
    %v234 = vunpack.c.l.bf16 %v232
    %v235 = vmul.f32 %v233, %v234
    %v236 = vpack.c.bf16 %v235, %v235
    %v237 = vld [vmem:[#allocation7] sm:$0xf]
    %v238 = vld [vmem:[#allocation7 + $0x4] sm:$0xf]
    %v239 = vld [vmem:[#allocation7 + $0x8] sm:$0xf]
    %v240 = vld [vmem:[#allocation7 + $0xc] sm:$0xf]
    %v241 = vld [vmem:[#allocation7 + $0x10] sm:$0xf]
    %v242 = vld [vmem:[#allocation7 + $0x14] sm:$0xf]
    %v243 = vld [vmem:[#allocation7 + $0x18] sm:$0xf]
    %v244 = vld [vmem:[#allocation7 + $0x1c] sm:$0xf]
    %v245 = vld [vmem:[#allocation7 + $0x20] sm:$0xf]
    %v246 = vld [vmem:[#allocation7 + $0x24] sm:$0xf]
    %v247 = vld [vmem:[#allocation7 + $0x28] sm:$0xf]
    %v248 = vld [vmem:[#allocation7 + $0x2c] sm:$0xf]
    %v249 = vld [vmem:[#allocation7 + $0x30] sm:$0xf]
    %v250 = vld [vmem:[#allocation7 + $0x34] sm:$0xf]
    %v251 = vld [vmem:[#allocation7 + $0x38] sm:$0xf]
    %v252 = vld [vmem:[#allocation7 + $0x3c] sm:$0xf]
    %v253 = vld [vmem:[%s6] sm:$0x1]
    %v255 = vperm.slane %v253, 0
    %v273 = vunpack.c.l.b16 %v237
    %v274 = vunpack.c.l.b16 %v238
    %v275 = vunpack.c.l.b16 %v239
    %v276 = vunpack.c.l.b16 %v240
    %v277 = vunpack.c.l.b16 %v241
    %v278 = vunpack.c.l.b16 %v242
    %v279 = vunpack.c.l.b16 %v243
    %v280 = vunpack.c.l.b16 %v244
    %v281 = vunpack.c.l.b16 %v245
    %v282 = vunpack.c.l.b16 %v246
    %v283 = vunpack.c.l.b16 %v247
    %v284 = vunpack.c.l.b16 %v248
    %v285 = vunpack.c.l.b16 %v249
    %v286 = vunpack.c.l.b16 %v250
    %v287 = vunpack.c.l.b16 %v251
    %v288 = vunpack.c.l.b16 %v252
    %v289 = vpack.c.b16 %v274, %v273
    %v290 = vpack.c.b16 %v276, %v275
    %v291 = vpack.c.b16 %v278, %v277
    %v292 = vpack.c.b16 %v280, %v279
    %v293 = vpack.c.b16 %v282, %v281
    %v294 = vpack.c.b16 %v284, %v283
    %v295 = vpack.c.b16 %v286, %v285
    %v296 = vpack.c.b16 %v288, %v287
    %305 = vmatpush.bf16.msra.mxu0 %v296
    %306 = vmatpush.bf16.msra.mxu0 %v295
    %307 = vmatpush.bf16.msra.mxu0 %v294
    %308 = vmatpush.bf16.msra.mxu0 %v293
    %309 = vmatpush.bf16.msra.mxu0 %v292
    %310 = vmatpush.bf16.msra.mxu0 %v291
    %311 = vmatpush.bf16.msra.mxu0 %v290
    %312 = vmatpush.bf16.msra.mxu0 %v289
    %313 = vmatmul.bf16.gmra.mxu0 %v236
    %v314 = vpop.f32.mrf.mxu0
    %v315 = vadd.f32 %v255, %v314
    %v316 = vpop.f32.mrf.mxu0
    %317 = vdwg.mxu0
    %vm318 = vcmask 130048
    %319 = vst.msk [vmem:[#allocation8] sm:$0xff] %vm318, %v315
    // Predicated region
    $region42: #{_mlp_forward_fused.1} parent=1 // pred_check
      _
    $region43: #{_mlp_forward_fused.1} parent=1 // pred_check_branch
      %321 = sbr.rel (0) target = $region45
    $region44: #{_mlp_forward_fused.1} parent=1 // pred_region
      %323 = vsyncadd [#allocation4], 0
      %s325 = sshll.u32 [#allocation8], 4
      %s326 = int_to_ptr.vmem [resolvable:$true] %s325
      %s327 = sshll.u32 %s7, 4
      %s328 = int_to_ptr.hbm [resolvable:$true] %s327
      %330 = dma.vmem_to_hbm [thread:$0]  %s326, 128, %s328, [#allocation4]
    $region45: #{_mlp_forward_fused.1} parent=1 // pred_fallthru
      _
    // Predicated region
    $region46: #{_mlp_forward_fused.1} parent=1 // pred_check
      _
    $region47: #{_mlp_forward_fused.1} parent=1 // pred_check_branch
      %332 = sbr.rel (0) target = $region49
    $region48: #{_mlp_forward_fused.1} parent=1 // pred_region
      %334 = dma.done [#allocation4], 128
    $region49: #{_mlp_forward_fused.1} parent=1 // pred_fallthru
      _
    %335 = vsyncpa [#allocation3], 1
    %336 = vsyncpa [#allocation6], 1
    %337 = vsyncpa [#allocation4], 1

// kernel: _mlp_forward_fused.1
$region0: #{_mlp_forward_fused.1}
  #allocation0 [shape = 'u32[]', space=smem, size = 0x4, offset = 0x4, fixed_abs, tag = 'smem constant byte address 0x4 - core index']
  #allocation1 [shape = 'u32[72,128]{1,0:T(1,128)}', space=vmem, size = 0x9000, scoped, tag = 'internal scratch']
  %s0 = inlined_call_operand.vmem [shape: bf16[8,32], index: 0, kind: input, shape index: {}]
  %s1 = inlined_call_operand.hbm [shape: bf16[32,128], index: 1, kind: input, shape index: {}]
  %s2 = inlined_call_operand.vmem [shape: f32[1,128], index: 2, kind: input, shape index: {}]
  %s3 = inlined_call_operand.hbm [shape: bf16[128,128], index: 3, kind: input, shape index: {}]
  %s4 = inlined_call_operand.vmem [shape: f32[1,128], index: 4, kind: input, shape index: {}]
  %s5 = inlined_call_operand.hbm [shape: bf16[128,128], index: 5, kind: input, shape index: {}]
  %s6 = inlined_call_operand.vmem [shape: f32[1,128], index: 6, kind: input, shape index: {}]
  %s7 = inlined_call_operand.hbm [shape: f32[8,16], index: 7, kind: output, shape index: {}]
  %s8 = sld [smem:[#allocation0]]
  $region50: #{_mlp_forward_fused.1} parent=0
    _
  %s10 = ssub.s32 1, %s8
  %s11 = scalar_select 0, %s10, %s8
  $region1: #{_mlp_forward_fused.1} parent=0
    #allocation2 [shape = 'u8[8192]{0}', space=vmem, size = 0x2000, scoped, tag = 'input window, operand 1, single buffered']
    #allocation3 [shape = 's32[1]{0}', space=sflag, size = 0x4, scoped, tag = 'scoped memory for _mlp_forward_fused.1']
    #allocation4 [shape = 's32[1]{0}', space=sflag, size = 0x4, scoped, tag = 'scoped memory for _mlp_forward_fused.1']
    #allocation5 [shape = 'u8[32768]{0}', space=vmem, size = 0x8000, scoped, tag = 'input window, operand 3, single buffered']
    #allocation6 [shape = 's32[1]{0}', space=sflag, size = 0x4, scoped, tag = 'scoped memory for _mlp_forward_fused.1']
    #allocation7 [shape = 'u8[32768]{0}', space=vmem, size = 0x8000, scoped, tag = 'input window, operand 5, single buffered']
    #allocation8 [shape = 'u8[4096]{0}', space=vmem, size = 0x1000, scoped, tag = 'output window, operand 0, single buffered']
    %12 = vsyncpa [#allocation3], 0
    %13 = vsyncpa [#allocation6], 0
    %14 = vsyncpa [#allocation4], 0
    // Predicated region
    $region2: #{_mlp_forward_fused.1} parent=1 // pred_check
      _
    $region3: #{_mlp_forward_fused.1} parent=1 // pred_check_branch
      %16 = sbr.rel (0) target = $region5
    $region4: #{_mlp_forward_fused.1} parent=1 // pred_region
      _
    $region5: #{_mlp_forward_fused.1} parent=1 // pred_fallthru
      _
    // Predicated region
    $region6: #{_mlp_forward_fused.1} parent=1 // pred_check
      _
    $region7: #{_mlp_forward_fused.1} parent=1 // pred_check_branch
      %18 = sbr.rel (0) target = $region9
    $region8: #{_mlp_forward_fused.1} parent=1 // pred_region
      %20 = vsyncadd [#allocation3], 0
      %s21 = sshll.u32 %s1, 4
      %s22 = int_to_ptr.hbm [resolvable:$true] %s21
      %s23 = sshll.u32 [#allocation2], 4
      %s24 = int_to_ptr.vmem [resolvable:$true] %s23
      %29 = dma.hbm_to_vmem [thread:$0]  %s22, 256, %s24, [#allocation3], 64, 64, 4
    $region9: #{_mlp_forward_fused.1} parent=1 // pred_fallthru
      _
    // Predicated region
    $region10: #{_mlp_forward_fused.1} parent=1 // pred_check
      _
    $region11: #{_mlp_forward_fused.1} parent=1 // pred_check_branch
      %31 = sbr.rel (0) target = $region13
    $region12: #{_mlp_forward_fused.1} parent=1 // pred_region
      _
    $region13: #{_mlp_forward_fused.1} parent=1 // pred_fallthru
      _
    // Predicated region
    $region14: #{_mlp_forward_fused.1} parent=1 // pred_check
      _
    $region15: #{_mlp_forward_fused.1} parent=1 // pred_check_branch
      %33 = sbr.rel (0) target = $region17
    $region16: #{_mlp_forward_fused.1} parent=1 // pred_region
      %35 = vsyncadd [#allocation6], 0
      %s36 = sshll.u32 %s3, 4
      %s37 = int_to_ptr.hbm [resolvable:$true] %s36
      %s38 = sshll.u32 [#allocation5], 4
      %s39 = int_to_ptr.vmem [resolvable:$true] %s38
      %44 = dma.hbm_to_vmem [thread:$0]  %s37, 1024, %s39, [#allocation6], 64, 64, 4
    $region17: #{_mlp_forward_fused.1} parent=1 // pred_fallthru
      _
    // Predicated region
    $region18: #{_mlp_forward_fused.1} parent=1 // pred_check
      _
    $region19: #{_mlp_forward_fused.1} parent=1 // pred_check_branch
      %46 = sbr.rel (0) target = $region21
    $region20: #{_mlp_forward_fused.1} parent=1 // pred_region
      _
    $region21: #{_mlp_forward_fused.1} parent=1 // pred_fallthru
      _
    // Predicated region
    $region22: #{_mlp_forward_fused.1} parent=1 // pred_check
      _
    $region23: #{_mlp_forward_fused.1} parent=1 // pred_check_branch
      %48 = sbr.rel (0) target = $region25
    $region24: #{_mlp_forward_fused.1} parent=1 // pred_region
      %50 = vsyncadd [#allocation6], 0
      %s51 = sshll.u32 %s5, 4
      %s52 = int_to_ptr.hbm [resolvable:$true] %s51
      %s53 = sshll.u32 [#allocation7], 4
      %s54 = int_to_ptr.vmem [resolvable:$true] %s53
      %59 = dma.hbm_to_vmem [thread:$0]  %s52, 1024, %s54, [#allocation6], 64, 64, 4
    $region25: #{_mlp_forward_fused.1} parent=1 // pred_fallthru
      _
    // Predicated region
    $region26: #{_mlp_forward_fused.1} parent=1 // pred_check
      _
    $region27: #{_mlp_forward_fused.1} parent=1 // pred_check_branch
      %61 = sbr.rel (0) target = $region29
    $region28: #{_mlp_forward_fused.1} parent=1 // pred_region
      _
    $region29: #{_mlp_forward_fused.1} parent=1 // pred_fallthru
      _
    // Predicated region
    $region30: #{_mlp_forward_fused.1} parent=1 // pred_check
      _
    $region31: #{_mlp_forward_fused.1} parent=1 // pred_check_branch
      %63 = sbr.rel (0) target = $region33
    $region32: #{_mlp_forward_fused.1} parent=1 // pred_region
      %65 = dma.done [#allocation3], 256
    $region33: #{_mlp_forward_fused.1} parent=1 // pred_fallthru
      _
    // Predicated region
    $region34: #{_mlp_forward_fused.1} parent=1 // pred_check
      _
    $region35: #{_mlp_forward_fused.1} parent=1 // pred_check_branch
      %67 = sbr.rel (0) target = $region37
    $region36: #{_mlp_forward_fused.1} parent=1 // pred_region
      %69 = dma.done [#allocation6], 1024
    $region37: #{_mlp_forward_fused.1} parent=1 // pred_fallthru
      _
    // Predicated region
    $region38: #{_mlp_forward_fused.1} parent=1 // pred_check
      _
    $region39: #{_mlp_forward_fused.1} parent=1 // pred_check_branch
      %71 = sbr.rel (0) target = $region41
    $region40: #{_mlp_forward_fused.1} parent=1 // pred_region
      %73 = dma.done [#allocation6], 1024
    $region41: #{_mlp_forward_fused.1} parent=1 // pred_fallthru
      _
    %v76 = vld [vmem:[%s0] sm:$0xf]
    %v77 = vld [vmem:[#allocation2] sm:$0xf]
    %v78 = vld [vmem:[#allocation2 + $0x4] sm:$0xf]
    %v79 = vld [vmem:[#allocation2 + $0x8] sm:$0xf]
    %v80 = vld [vmem:[#allocation2 + $0xc] sm:$0xf]
    %v81 = vld [vmem:[%s2] sm:$0x1]
    %v83 = vperm.slane %v81, 0
    %v89 = vunpack.c.l.b16 %v77
    %v90 = vunpack.c.l.b16 %v78
    %v91 = vunpack.c.l.b16 %v79
    %v92 = vunpack.c.l.b16 %v80
    %v93 = vpack.c.b16 %v90, %v89
    %v94 = vpack.c.b16 %v92, %v91
    %vm97 = vcmask 261120
    %v99 = vsel %vm97, %v76, 0
    %101 = vmatpush.bf16.msra.mxu0 0
    %102 = vmatpush.bf16.msra.mxu0 0
    %103 = vmatpush.bf16.msra.mxu0 0
    %104 = vmatpush.bf16.msra.mxu0 0
    %105 = vmatpush.bf16.msra.mxu0 0
    %106 = vmatpush.bf16.msra.mxu0 0
    %107 = vmatpush.bf16.msra.mxu0 %v94
    %108 = vmatpush.bf16.msra.mxu0 %v93
    %109 = vmatmul.bf16.gmra.mxu0 %v99
    %v110 = vpop.f32.mrf.mxu0
    %v111 = vadd.f32 %v83, %v110
    %v112 = vpop.f32.mrf.mxu0
    %113 = vdwg.mxu0
    %v114 = vpack.c.bf16 %v111, %v111
    %v115 = vxor.u32 %v114, 2147516416
    %v116 = vunpack.c.l.bf16 %v115
    %v117 = vmul.f32 %v116, 1.442695
    %v118 = vpow.pop %v117
    %v119 = vpack.c.bf16 %v118, %v118
    %v120 = vunpack.c.l.bf16 %v119
    %v121 = vadd.f32 %v120, 1.0
    %v122 = vpack.c.bf16 %v121, %v121
    %v123 = vunpack.c.h.bf16 1065369472
    %v124 = vunpack.c.l.bf16 1065369472
    %v125 = vunpack.c.h.bf16 %v122
    %v126 = vunpack.c.l.bf16 %v122
    %v127 = vrcp.pop %v125
    %v128 = vmul.f32 %v123, %v127
    %v129 = vrcp.pop %v126
    %v130 = vmul.f32 %v124, %v129
    %v131 = vpack.c.bf16 %v128, %v130
    %v132 = vunpack.c.l.bf16 %v114
    %v133 = vunpack.c.l.bf16 %v131
    %v134 = vmul.f32 %v132, %v133
    %v135 = vpack.c.bf16 %v134, %v134
    %v136 = vld [vmem:[#allocation5] sm:$0xf]
    %v137 = vld [vmem:[#allocation5 + $0x4] sm:$0xf]
    %v138 = vld [vmem:[#allocation5 + $0x8] sm:$0xf]
    %v139 = vld [vmem:[#allocation5 + $0xc] sm:$0xf]
    %v140 = vld [vmem:[#allocation5 + $0x10] sm:$0xf]
    %v141 = vld [vmem:[#allocation5 + $0x14] sm:$0xf]
    %v142 = vld [vmem:[#allocation5 + $0x18] sm:$0xf]
    %v143 = vld [vmem:[#allocation5 + $0x1c] sm:$0xf]
    %v144 = vld [vmem:[#allocation5 + $0x20] sm:$0xf]
    %v145 = vld [vmem:[#allocation5 + $0x24] sm:$0xf]
    %v146 = vld [vmem:[#allocation5 + $0x28] sm:$0xf]
    %v147 = vld [vmem:[#allocation5 + $0x2c] sm:$0xf]
    %v148 = vld [vmem:[#allocation5 + $0x30] sm:$0xf]
    %v149 = vld [vmem:[#allocation5 + $0x34] sm:$0xf]
    %v150 = vld [vmem:[#allocation5 + $0x38] sm:$0xf]
    %v151 = vld [vmem:[#allocation5 + $0x3c] sm:$0xf]
    %v152 = vld [vmem:[%s4] sm:$0x1]
    %v154 = vperm.slane %v152, 0
    %v172 = vunpack.c.l.b16 %v136
    %v173 = vunpack.c.l.b16 %v137
    %v174 = vunpack.c.l.b16 %v138
    %v175 = vunpack.c.l.b16 %v139
    %v176 = vunpack.c.l.b16 %v140
    %v177 = vunpack.c.l.b16 %v141
    %v178 = vunpack.c.l.b16 %v142
    %v179 = vunpack.c.l.b16 %v143
    %v180 = vunpack.c.l.b16 %v144
    %v181 = vunpack.c.l.b16 %v145
    %v182 = vunpack.c.l.b16 %v146
    %v183 = vunpack.c.l.b16 %v147
    %v184 = vunpack.c.l.b16 %v148
    %v185 = vunpack.c.l.b16 %v149
    %v186 = vunpack.c.l.b16 %v150
    %v187 = vunpack.c.l.b16 %v151
    %v188 = vpack.c.b16 %v173, %v172
    %v189 = vpack.c.b16 %v175, %v174
    %v190 = vpack.c.b16 %v177, %v176
    %v191 = vpack.c.b16 %v179, %v178
    %v192 = vpack.c.b16 %v181, %v180
    %v193 = vpack.c.b16 %v183, %v182
    %v194 = vpack.c.b16 %v185, %v184
    %v195 = vpack.c.b16 %v187, %v186
    %204 = vmatpush.bf16.msra.mxu0 %v195
    %205 = vmatpush.bf16.msra.mxu0 %v194
    %206 = vmatpush.bf16.msra.mxu0 %v193
    %207 = vmatpush.bf16.msra.mxu0 %v192
    %208 = vmatpush.bf16.msra.mxu0 %v191
    %209 = vmatpush.bf16.msra.mxu0 %v190
    %210 = vmatpush.bf16.msra.mxu0 %v189
    %211 = vmatpush.bf16.msra.mxu0 %v188
    %212 = vmatmul.bf16.gmra.mxu0 %v135
    %v213 = vpop.f32.mrf.mxu0
    %v214 = vadd.f32 %v154, %v213
    %v215 = vpop.f32.mrf.mxu0
    %216 = vdwg.mxu0
    %v217 = vpack.c.bf16 %v214, %v214
    %v218 = vxor.u32 %v217, 2147516416
    %v219 = vunpack.c.l.bf16 %v218
    %v220 = vmul.f32 %v219, 1.442695
    %v221 = vpow.pop %v220
    %v222 = vpack.c.bf16 %v221, %v221
    %v223 = vunpack.c.l.bf16 %v222
    %v224 = vadd.f32 %v223, 1.0
    %v225 = vpack.c.bf16 %v224, %v224
    %v226 = vunpack.c.h.bf16 %v225
    %v227 = vunpack.c.l.bf16 %v225
    %v228 = vrcp.pop %v226
    %v229 = vmul.f32 %v123, %v228
    %v230 = vrcp.pop %v227
    %v231 = vmul.f32 %v124, %v230
    %v232 = vpack.c.bf16 %v229, %v231
    %v233 = vunpack.c.l.bf16 %v217
    %v234 = vunpack.c.l.bf16 %v232
    %v235 = vmul.f32 %v233, %v234
    %v236 = vpack.c.bf16 %v235, %v235
    %v237 = vld [vmem:[#allocation7] sm:$0xf]
    %v238 = vld [vmem:[#allocation7 + $0x4] sm:$0xf]
    %v239 = vld [vmem:[#allocation7 + $0x8] sm:$0xf]
    %v240 = vld [vmem:[#allocation7 + $0xc] sm:$0xf]
    %v241 = vld [vmem:[#allocation7 + $0x10] sm:$0xf]
    %v242 = vld [vmem:[#allocation7 + $0x14] sm:$0xf]
    %v243 = vld [vmem:[#allocation7 + $0x18] sm:$0xf]
    %v244 = vld [vmem:[#allocation7 + $0x1c] sm:$0xf]
    %v245 = vld [vmem:[#allocation7 + $0x20] sm:$0xf]
    %v246 = vld [vmem:[#allocation7 + $0x24] sm:$0xf]
    %v247 = vld [vmem:[#allocation7 + $0x28] sm:$0xf]
    %v248 = vld [vmem:[#allocation7 + $0x2c] sm:$0xf]
    %v249 = vld [vmem:[#allocation7 + $0x30] sm:$0xf]
    %v250 = vld [vmem:[#allocation7 + $0x34] sm:$0xf]
    %v251 = vld [vmem:[#allocation7 + $0x38] sm:$0xf]
    %v252 = vld [vmem:[#allocation7 + $0x3c] sm:$0xf]
    %v253 = vld [vmem:[%s6] sm:$0x1]
    %v255 = vperm.slane %v253, 0
    %v273 = vunpack.c.l.b16 %v237
    %v274 = vunpack.c.l.b16 %v238
    %v275 = vunpack.c.l.b16 %v239
    %v276 = vunpack.c.l.b16 %v240
    %v277 = vunpack.c.l.b16 %v241
    %v278 = vunpack.c.l.b16 %v242
    %v279 = vunpack.c.l.b16 %v243
    %v280 = vunpack.c.l.b16 %v244
    %v281 = vunpack.c.l.b16 %v245
    %v282 = vunpack.c.l.b16 %v246
    %v283 = vunpack.c.l.b16 %v247
    %v284 = vunpack.c.l.b16 %v248
    %v285 = vunpack.c.l.b16 %v249
    %v286 = vunpack.c.l.b16 %v250
    %v287 = vunpack.c.l.b16 %v251
    %v288 = vunpack.c.l.b16 %v252
    %v289 = vpack.c.b16 %v274, %v273
    %v290 = vpack.c.b16 %v276, %v275
    %v291 = vpack.c.b16 %v278, %v277
    %v292 = vpack.c.b16 %v280, %v279
    %v293 = vpack.c.b16 %v282, %v281
    %v294 = vpack.c.b16 %v284, %v283
    %v295 = vpack.c.b16 %v286, %v285
    %v296 = vpack.c.b16 %v288, %v287
    %305 = vmatpush.bf16.msra.mxu0 %v296
    %306 = vmatpush.bf16.msra.mxu0 %v295
    %307 = vmatpush.bf16.msra.mxu0 %v294
    %308 = vmatpush.bf16.msra.mxu0 %v293
    %309 = vmatpush.bf16.msra.mxu0 %v292
    %310 = vmatpush.bf16.msra.mxu0 %v291
    %311 = vmatpush.bf16.msra.mxu0 %v290
    %312 = vmatpush.bf16.msra.mxu0 %v289
    %313 = vmatmul.bf16.gmra.mxu0 %v236
    %v314 = vpop.f32.mrf.mxu0
    %v315 = vadd.f32 %v255, %v314
    %v316 = vpop.f32.mrf.mxu0
    %317 = vdwg.mxu0
    %vm318 = vcmask 130048
    %319 = vst.msk [vmem:[#allocation8] sm:$0xff] %vm318, %v315
    // Predicated region
    $region42: #{_mlp_forward_fused.1} parent=1 // pred_check
      _
    $region43: #{_mlp_forward_fused.1} parent=1 // pred_check_branch
      %321 = sbr.rel (0) target = $region45
    $region44: #{_mlp_forward_fused.1} parent=1 // pred_region
      %323 = vsyncadd [#allocation4], 0
      %s325 = sshll.u32 [#allocation8], 4
      %s326 = int_to_ptr.vmem [resolvable:$true] %s325
      %s327 = sshll.u32 %s7, 4
      %s328 = int_to_ptr.hbm [resolvable:$true] %s327
      %330 = dma.vmem_to_hbm [thread:$0]  %s326, 128, %s328, [#allocation4]
    $region45: #{_mlp_forward_fused.1} parent=1 // pred_fallthru
      _
    // Predicated region
    $region46: #{_mlp_forward_fused.1} parent=1 // pred_check
      _
    $region47: #{_mlp_forward_fused.1} parent=1 // pred_check_branch
      %332 = sbr.rel (0) target = $region49
    $region48: #{_mlp_forward_fused.1} parent=1 // pred_region
      %334 = dma.done [#allocation4], 128
    $region49: #{_mlp_forward_fused.1} parent=1 // pred_fallthru
      _
    %335 = vsyncpa [#allocation3], 1
    %336 = vsyncpa [#allocation6], 1
    %337 = vsyncpa [#allocation4], 1

</llo_original>
